<compile_context>
chip_gen: v7x
topology: tpu7x:2x2x1
jax: 0.10.0
libtpu: 0.0.40
codegen_flags: <defaults>
</compile_context>

<pallas_src>
import jax
import jax.numpy as jnp
from jax import lax
from jax.experimental import pallas as pl
from jax.experimental.pallas import tpu as pltpu

TAU = 0.1
LAMBDA = 0.75
EPS = 1e-8

# NT contraction: contract dim 1 of both operands (no explicit transpose).
_CONTRACT_LAST = (((1,), (1,)), ((), ()))


def _row_sums_lane_dense(x):
    """Row sums of a 2-D f32 array, returned lane-dense as (1, rows).

    Uses a ones-vector contraction on the MXU (idle at D=32) instead of an
    XLU lane-reduce + relayout.
    """
    ones = jnp.ones((1, x.shape[1]), jnp.float32)
    return lax.dot_general(ones, x, _CONTRACT_LAST,
                           preferred_element_type=jnp.float32)


def _scaled_cos(l, v, inv_tau, eps_sq):
    """Per-row cosine similarity / tau, lane-dense (1, rows).

    Matches torch.nn.CosineSimilarity exactly: dot / max(||l||*||v||, eps),
    since rsqrt(max(s_l*s_v, eps^2)) == 1 / max(||l||*||v||, eps).
    """
    dot_lv = _row_sums_lane_dense(l * v)
    s_l = _row_sums_lane_dense(l * l)
    s_v = _row_sums_lane_dense(v * v)
    return dot_lv * lax.rsqrt(jnp.maximum(s_l * s_v, eps_sq)) * inv_tau


def _convirt_kernel(l_ref, v_ref, loss_l_ref, loss_v_ref, den_v_sc):
    i = pl.program_id(0)
    n_steps = pl.num_programs(0)
    tm = loss_l_ref.shape[1]

    f32 = jnp.float32
    inv_tau = f32(1.0 / TAU)
    eps_sq = f32(EPS) * f32(EPS)

    @pl.when(i == 0)
    def _init():
        den_v_sc[...] = jnp.zeros_like(den_v_sc)

    # Resident full embeddings + this step's row tile (dynamic sublane slice).
    row0 = pl.multiple_of(i * tm, tm)
    l_t = l_ref[pl.ds(row0, tm), :].astype(f32)        # (TM, D)
    v_t = v_ref[pl.ds(row0, tm), :].astype(f32)        # (TM, D)
    v_all = v_ref[...].astype(f32)                     # (N, D)

    # Row-normalize: a / clamp(||a||, min=eps) == a * rsqrt(max(||a||^2, eps^2)).
    # One rsqrt per row (EUP work = rows, not rows*D).
    inv_l = lax.rsqrt(jnp.maximum(jnp.sum(l_t * l_t, axis=1, keepdims=True), eps_sq))
    inv_v = lax.rsqrt(jnp.maximum(jnp.sum(v_all * v_all, axis=1, keepdims=True), eps_sq))
    ln_t = l_t * inv_l                                 # (TM, D)
    vn = v_all * inv_v                                 # (N, D)

    # Pairwise cosine similarities for this row tile: MXU NT contraction.
    sim = lax.dot_general(ln_t, vn, _CONTRACT_LAST,
                          preferred_element_type=f32)  # (TM, N)
    e = jnp.exp(sim * inv_tau)                         # (TM, N); sim dead here

    # loss_l for this tile, lane-dense (1, TM):
    #   -log(exp(cos/tau) / den_l) == log(den_l) - cos/tau
    den_l = _row_sums_lane_dense(e)                    # (1, TM) row sums (MXU)
    loss_l_ref[...] = jnp.log(den_l) - _scaled_cos(l_t, v_t, inv_tau, eps_sq)

    # Online den_v accumulation (column sums over all row tiles).
    den_v_sc[...] += jnp.sum(e, axis=0, keepdims=True)  # (1, N)

    @pl.when(i == n_steps - 1)
    def _finalize():
        l_all = l_ref[...].astype(f32)
        cos_all = _scaled_cos(l_all, v_all, inv_tau, eps_sq)       # (1, N)
        loss_v_ref[...] = jnp.log(den_v_sc[...]) - cos_all


def convirt_loss(linguistic, visual, tm=None):
    n, d = linguistic.shape
    assert visual.shape == (n, d)
    if tm is None:
        if n <= 512:
            tm = n
        else:
            # Lane-aligned row tiles; fall back to gridless if none divides n.
            tm = next((t for t in (512, 256, 128) if n % t == 0), n)
    assert n % tm == 0, "row tile must divide the batch"
    assert tm == n or tm % 128 == 0, "tiled loss_l blocks must be lane-aligned"
    n_steps = n // tm

    loss_l2d, loss_v2d = pl.pallas_call(
        _convirt_kernel,
        grid=(n_steps,),
        out_shape=(
            jax.ShapeDtypeStruct((1, n), jnp.float32),
            jax.ShapeDtypeStruct((1, n), jnp.float32),
        ),
        in_specs=[
            pl.BlockSpec((n, d), lambda i: (0, 0)),    # linguistic, resident
            pl.BlockSpec((n, d), lambda i: (0, 0)),    # visual, resident
        ],
        out_specs=(
            pl.BlockSpec((1, tm), lambda i: (0, i)),   # loss_l, one lane tile / step
            pl.BlockSpec((1, n), lambda i: (0, 0)),    # loss_v, finalized last step
        ),
        scratch_shapes=[pltpu.VMEM((1, n), jnp.float32)],   # den_v accumulator
        compiler_params=pltpu.CompilerParams(
            dimension_semantics=("arbitrary",),        # den_v reduces over row tiles
            vmem_limit_bytes=32 * 1024 * 1024,         # explicit budget (v7x-safe)
        ),
    )(linguistic, visual)

    loss_l = loss_l2d[0]          # (N,)
    loss_v = loss_v2d[0]          # (N,)
    # Scalar mean reduced in the wrapper (no padded VMEM tile for one value).
    loss = jnp.mean(LAMBDA * loss_v + (1.0 - LAMBDA) * loss_l)
    return loss, loss_l, loss_v


def convirt_loss_ref(linguistic, visual):
    # Pure-JAX reference mirroring the torch module exactly.
    l = linguistic.astype(jnp.float32)
    v = visual.astype(jnp.float32)
    l_n = jnp.linalg.norm(l, axis=1, keepdims=True)
    v_n = jnp.linalg.norm(v, axis=1, keepdims=True)
    ln = l / jnp.maximum(l_n, EPS)
    vn = v / jnp.maximum(v_n, EPS)
    sim = ln @ vn.T
    cos = jnp.sum(l * v, axis=1) / jnp.maximum(l_n[:, 0] * v_n[:, 0], EPS)
    nom = jnp.exp(cos / TAU)
    den_l = jnp.sum(jnp.exp(sim / TAU), axis=1)
    den_v = jnp.sum(jnp.exp(sim.T / TAU), axis=1)
    loss_l = -jnp.log(nom / den_l)
    loss_v = -jnp.log(nom / den_v)
    loss = jnp.mean(LAMBDA * loss_v + (1.0 - LAMBDA) * loss_l)
    return loss, loss_l, loss_v


if __name__ == "__main__":
    key = jax.random.PRNGKey(0)
    k1, k2, k3, k4 = jax.random.split(key, 4)

    # Small shape consistent with the module: batch=8 projected embeddings, hidden=32.
    N, D = 8, 32
    linguistic = jax.random.normal(k1, (N, D), dtype=jnp.float32)
    visual = jax.random.normal(k2, (N, D), dtype=jnp.float32)

    out = convirt_loss(linguistic, visual)
    jax.block_until_ready(out)
    ref = convirt_loss_ref(linguistic, visual)
    for a, b in zip(out, ref):
        assert jnp.allclose(a, b, atol=1e-4, rtol=1e-4), (a, b)

    # Multi-tile path (2 grid steps): exercises the online den_v accumulator
    # and the per-tile lane-dense loss_l writes.
    N2, TM2 = 256, 128
    ling2 = jax.random.normal(k3, (N2, D), dtype=jnp.float32)
    vis2 = jax.random.normal(k4, (N2, D), dtype=jnp.float32)
    out2 = convirt_loss(ling2, vis2, tm=TM2)
    jax.block_until_ready(out2)
    ref2 = convirt_loss_ref(ling2, vis2)
    for a, b in zip(out2, ref2):
        assert jnp.allclose(a, b, atol=1e-3, rtol=1e-3), (a, b)

    print("KERNEL_OK")
</pallas_src>

<mosaic_0001>
module attributes {stable_mosaic.version = 11 : i64} {
  func.func @_convirt_kernel(%arg0: i32, %arg1: memref<8x32xf32, #tpu.memory_space<vmem>>, %arg2: memref<8x32xf32, #tpu.memory_space<vmem>>, %arg3: memref<1x8xf32, #tpu.memory_space<vmem>>, %arg4: memref<1x8xf32, #tpu.memory_space<vmem>>, %arg5: memref<1x8xf32, #tpu.memory_space<vmem>>) attributes {dimension_semantics = [#tpu.dimension_semantics<arbitrary>], iteration_bounds = array<i64: 1>, scalar_prefetch = 0 : i64, scratch_operands = 1 : i64, tpu.core_type = #tpu.core_type<tc>, window_params = [{pipeline_mode = #tpu.pipeline_mode<synchronous>, transform_indices = @transform_0, window_bounds = array<i64: 8, 32>}, {pipeline_mode = #tpu.pipeline_mode<synchronous>, transform_indices = @transform_1, window_bounds = array<i64: 8, 32>}, {transform_indices = @transform_2, window_bounds = array<i64: 1, 8>}, {pipeline_mode = #tpu.pipeline_mode<synchronous>, transform_indices = @transform_3, window_bounds = array<i64: 1, 8>}]} {
    %cst = arith.constant 9.99999993E-9 : f32
    %cst_0 = arith.constant 9.99999993E-9 : f32
    %0 = arith.mulf %cst, %cst_0 : f32
    %c0_i32 = arith.constant 0 : i32
    %1 = arith.cmpi eq, %arg0, %c0_i32 : i32
    %2 = arith.extui %1 : i1 to i32
    %c0_i32_1 = arith.constant 0 : i32
    %3 = arith.cmpi ne, %2, %c0_i32_1 : i32
    scf.if %3 {
      %cst_28 = arith.constant 0.000000e+00 : f32
      %60 = vector.broadcast %cst_28 : f32 to vector<1x8xf32>
      %c0_29 = arith.constant 0 : index
      %c0_30 = arith.constant 0 : index
      %61 = vector.load %arg5[%c0_29, %c0_30] : memref<1x8xf32, #tpu.memory_space<vmem>>, vector<1x8xf32>
      tpu.vector_store %arg5[%c0_29, %c0_30], %60 {strides = array<i32>} : memref<1x8xf32, #tpu.memory_space<vmem>>, vector<1x8xf32>,
    } else {
    }
    %c8_i32 = arith.constant 8 : i32
    %4 = arith.muli %arg0, %c8_i32 : i32
    %5 = tpu.assume_multiple %4, 8 : i32
    %6 = arith.index_cast %5 : i32 to index
    %c0 = arith.constant 0 : index
    %7 = vector.load %arg1[%6, %c0] : memref<8x32xf32, #tpu.memory_space<vmem>>, vector<8x32xf32>
    %8 = arith.index_cast %5 : i32 to index
    %c0_2 = arith.constant 0 : index
    %9 = vector.load %arg2[%8, %c0_2] : memref<8x32xf32, #tpu.memory_space<vmem>>, vector<8x32xf32>
    %c0_3 = arith.constant 0 : index
    %c0_4 = arith.constant 0 : index
    %10 = vector.load %arg2[%c0_3, %c0_4] : memref<8x32xf32, #tpu.memory_space<vmem>>, vector<8x32xf32>
    %11 = arith.mulf %7, %7 : vector<8x32xf32>
    %cst_5 = arith.constant dense<0.000000e+00> : vector<8xf32>
    %12 = vector.multi_reduction <add>, %11, %cst_5 [1] : vector<8x32xf32> to vector<8xf32>
    %13 = vector.shape_cast %12 : vector<8xf32> to vector<8x1xf32>
    %14 = vector.broadcast %0 : f32 to vector<8x1xf32>
    %15 = arith.maximumf %13, %14 : vector<8x1xf32>
    %16 = math.rsqrt %15 : vector<8x1xf32>
    %17 = arith.mulf %10, %10 : vector<8x32xf32>
    %cst_6 = arith.constant dense<0.000000e+00> : vector<8xf32>
    %18 = vector.multi_reduction <add>, %17, %cst_6 [1] : vector<8x32xf32> to vector<8xf32>
    %19 = vector.shape_cast %18 : vector<8xf32> to vector<8x1xf32>
    %20 = vector.broadcast %0 : f32 to vector<8x1xf32>
    %21 = arith.maximumf %19, %20 : vector<8x1xf32>
    %22 = math.rsqrt %21 : vector<8x1xf32>
    %23 = vector.broadcast %16 : vector<8x1xf32> to vector<8x32xf32>
    %24 = arith.mulf %7, %23 : vector<8x32xf32>
    %25 = vector.broadcast %22 : vector<8x1xf32> to vector<8x32xf32>
    %26 = arith.mulf %10, %25 : vector<8x32xf32>
    %cst_7 = arith.constant dense<0.000000e+00> : vector<8x8xf32>
    %27 = tpu.matmul %24, %26, %cst_7 {dimension_numbers = #tpu.dot_dimension_numbers<[1], [1], [0], [0], [0, 0, 1, 0], [], []>} : vector<8x32xf32>, vector<8x32xf32>, vector<8x8xf32> -> vector<8x8xf32>
    %cst_8 = arith.constant 1.000000e+01 : f32
    %28 = vector.broadcast %cst_8 : f32 to vector<8x8xf32>
    %29 = arith.mulf %27, %28 : vector<8x8xf32>
    %30 = math.exp %29 : vector<8x8xf32>
    %cst_9 = arith.constant 1.000000e+00 : f32
    %31 = vector.broadcast %cst_9 : f32 to vector<1x8xf32>
    %cst_10 = arith.constant dense<0.000000e+00> : vector<1x8xf32>
    %32 = tpu.matmul %31, %30, %cst_10 {dimension_numbers = #tpu.dot_dimension_numbers<[1], [1], [0], [0], [0, 0, 1, 0], [], []>} : vector<1x8xf32>, vector<8x8xf32>, vector<1x8xf32> -> vector<1x8xf32>
    %33 = math.log %32 : vector<1x8xf32>
    %34 = arith.mulf %7, %9 : vector<8x32xf32>
    %cst_11 = arith.constant 1.000000e+00 : f32
    %35 = vector.broadcast %cst_11 : f32 to vector<1x32xf32>
    %cst_12 = arith.constant dense<0.000000e+00> : vector<1x8xf32>
    %36 = tpu.matmul %35, %34, %cst_12 {dimension_numbers = #tpu.dot_dimension_numbers<[1], [1], [0], [0], [0, 0, 1, 0], [], []>} : vector<1x32xf32>, vector<8x32xf32>, vector<1x8xf32> -> vector<1x8xf32>
    %37 = arith.mulf %7, %7 : vector<8x32xf32>
    %cst_13 = arith.constant 1.000000e+00 : f32
    %38 = vector.broadcast %cst_13 : f32 to vector<1x32xf32>
    %cst_14 = arith.constant dense<0.000000e+00> : vector<1x8xf32>
    %39 = tpu.matmul %38, %37, %cst_14 {dimension_numbers = #tpu.dot_dimension_numbers<[1], [1], [0], [0], [0, 0, 1, 0], [], []>} : vector<1x32xf32>, vector<8x32xf32>, vector<1x8xf32> -> vector<1x8xf32>
    %40 = arith.mulf %9, %9 : vector<8x32xf32>
    %cst_15 = arith.constant 1.000000e+00 : f32
    %41 = vector.broadcast %cst_15 : f32 to vector<1x32xf32>
    %cst_16 = arith.constant dense<0.000000e+00> : vector<1x8xf32>
    %42 = tpu.matmul %41, %40, %cst_16 {dimension_numbers = #tpu.dot_dimension_numbers<[1], [1], [0], [0], [0, 0, 1, 0], [], []>} : vector<1x32xf32>, vector<8x32xf32>, vector<1x8xf32> -> vector<1x8xf32>
    %43 = arith.mulf %39, %42 : vector<1x8xf32>
    %44 = vector.broadcast %0 : f32 to vector<1x8xf32>
    %45 = arith.maximumf %43, %44 : vector<1x8xf32>
    %46 = math.rsqrt %45 : vector<1x8xf32>
    %47 = arith.mulf %36, %46 : vector<1x8xf32>
    %cst_17 = arith.constant 1.000000e+01 : f32
    %48 = vector.broadcast %cst_17 : f32 to vector<1x8xf32>
    %49 = arith.mulf %47, %48 : vector<1x8xf32>
    %50 = arith.subf %33, %49 : vector<1x8xf32>
    %c0_18 = arith.constant 0 : index
    %c0_19 = arith.constant 0 : index
    %51 = vector.load %arg3[%c0_18, %c0_19] : memref<1x8xf32, #tpu.memory_space<vmem>>, vector<1x8xf32>
    tpu.vector_store %arg3[%c0_18, %c0_19], %50 {strides = array<i32>} : memref<1x8xf32, #tpu.memory_space<vmem>>, vector<1x8xf32>,
    %c0_20 = arith.constant 0 : index
    %c0_21 = arith.constant 0 : index
    %52 = vector.load %arg5[%c0_20, %c0_21] : memref<1x8xf32, #tpu.memory_space<vmem>>, vector<1x8xf32>
    %cst_22 = arith.constant dense<0.000000e+00> : vector<8xf32>
    %53 = vector.multi_reduction <add>, %30, %cst_22 [0] : vector<8x8xf32> to vector<8xf32>
    %54 = vector.shape_cast %53 : vector<8xf32> to vector<1x8xf32>
    %55 = arith.addf %52, %54 : vector<1x8xf32>
    %c0_23 = arith.constant 0 : index
    %c0_24 = arith.constant 0 : index
    %56 = vector.load %arg5[%c0_23, %c0_24] : memref<1x8xf32, #tpu.memory_space<vmem>>, vector<1x8xf32>
    tpu.vector_store %arg5[%c0_23, %c0_24], %55 {strides = array<i32>} : memref<1x8xf32, #tpu.memory_space<vmem>>, vector<1x8xf32>,
    %c0_i32_25 = arith.constant 0 : i32
    %57 = arith.cmpi eq, %arg0, %c0_i32_25 : i32
    %58 = arith.extui %57 : i1 to i32
    %cst_26 = arith.constant 1.000000e+01 : f32
    %c0_i32_27 = arith.constant 0 : i32
    %59 = arith.cmpi ne, %58, %c0_i32_27 : i32
    scf.if %59 {
      %c0_28 = arith.constant 0 : index
      %c0_29 = arith.constant 0 : index
      %60 = vector.load %arg1[%c0_28, %c0_29] : memref<8x32xf32, #tpu.memory_space<vmem>>, vector<8x32xf32>
      %61 = arith.mulf %60, %10 : vector<8x32xf32>
      %cst_30 = arith.constant 1.000000e+00 : f32
      %62 = vector.broadcast %cst_30 : f32 to vector<1x32xf32>
      %cst_31 = arith.constant dense<0.000000e+00> : vector<1x8xf32>
      %63 = tpu.matmul %62, %61, %cst_31 {dimension_numbers = #tpu.dot_dimension_numbers<[1], [1], [0], [0], [0, 0, 1, 0], [], []>} : vector<1x32xf32>, vector<8x32xf32>, vector<1x8xf32> -> vector<1x8xf32>
      %64 = arith.mulf %60, %60 : vector<8x32xf32>
      %cst_32 = arith.constant 1.000000e+00 : f32
      %65 = vector.broadcast %cst_32 : f32 to vector<1x32xf32>
      %cst_33 = arith.constant dense<0.000000e+00> : vector<1x8xf32>
      %66 = tpu.matmul %65, %64, %cst_33 {dimension_numbers = #tpu.dot_dimension_numbers<[1], [1], [0], [0], [0, 0, 1, 0], [], []>} : vector<1x32xf32>, vector<8x32xf32>, vector<1x8xf32> -> vector<1x8xf32>
      %67 = arith.mulf %10, %10 : vector<8x32xf32>
      %cst_34 = arith.constant 1.000000e+00 : f32
      %68 = vector.broadcast %cst_34 : f32 to vector<1x32xf32>
      %cst_35 = arith.constant dense<0.000000e+00> : vector<1x8xf32>
      %69 = tpu.matmul %68, %67, %cst_35 {dimension_numbers = #tpu.dot_dimension_numbers<[1], [1], [0], [0], [0, 0, 1, 0], [], []>} : vector<1x32xf32>, vector<8x32xf32>, vector<1x8xf32> -> vector<1x8xf32>
      %70 = arith.mulf %66, %69 : vector<1x8xf32>
      %71 = vector.broadcast %0 : f32 to vector<1x8xf32>
      %72 = arith.maximumf %70, %71 : vector<1x8xf32>
      %73 = math.rsqrt %72 : vector<1x8xf32>
      %74 = arith.mulf %63, %73 : vector<1x8xf32>
      %75 = vector.broadcast %cst_26 : f32 to vector<1x8xf32>
      %76 = arith.mulf %74, %75 : vector<1x8xf32>
      %c0_36 = arith.constant 0 : index
      %c0_37 = arith.constant 0 : index
      %77 = vector.load %arg5[%c0_36, %c0_37] : memref<1x8xf32, #tpu.memory_space<vmem>>, vector<1x8xf32>
      %78 = math.log %77 : vector<1x8xf32>
      %79 = arith.subf %78, %76 : vector<1x8xf32>
      %c0_38 = arith.constant 0 : index
      %c0_39 = arith.constant 0 : index
      %80 = vector.load %arg4[%c0_38, %c0_39] : memref<1x8xf32, #tpu.memory_space<vmem>>, vector<1x8xf32>
      tpu.vector_store %arg4[%c0_38, %c0_39], %79 {strides = array<i32>} : memref<1x8xf32, #tpu.memory_space<vmem>>, vector<1x8xf32>,
    } else {
    }
    return
  }
  func.func @transform_0(%arg0: i32) -> (i32, i32) {
    %c0_i32 = arith.constant 0 : i32
    %c0_i32_0 = arith.constant 0 : i32
    %c0_i32_1 = arith.constant 0 : i32
    return %c0_i32, %c0_i32_0 : i32, i32
  }
  func.func @transform_1(%arg0: i32) -> (i32, i32) {
    %c0_i32 = arith.constant 0 : i32
    %c0_i32_0 = arith.constant 0 : i32
    %c0_i32_1 = arith.constant 0 : i32
    return %c0_i32, %c0_i32_0 : i32, i32
  }
  func.func @transform_2(%arg0: i32) -> (i32, i32) {
    %c0_i32 = arith.constant 0 : i32
    %c0_i32_0 = arith.constant 0 : i32
    return %c0_i32, %arg0 : i32, i32
  }
  func.func @transform_3(%arg0: i32) -> (i32, i32) {
    %c0_i32 = arith.constant 0 : i32
    %c0_i32_0 = arith.constant 0 : i32
    %c0_i32_1 = arith.constant 0 : i32
    return %c0_i32, %c0_i32_0 : i32, i32
  }
}

</mosaic_0001>

<llo_original>
// kernel: tpu_custom_call.1
$region0: #{tpu_custom_call.1}
  #allocation0 [shape = 'u32[]', space=smem, size = 0x4, offset = 0x4, fixed_abs, tag = 'smem constant byte address 0x4 - core index']
  #allocation1 [shape = 'u32[144,128]{1,0:T(1,128)}', space=vmem, size = 0x12000, scoped, tag = 'internal scratch']
  #allocation2 [shape = 'f32[1,8]{1,0:T(1,128)}', space=vmem, size = 0x200, scoped, tag = 'scratch operand']
  %s0 = inlined_call_operand.hbm [shape: f32[8,32], index: 0, kind: input, shape index: {}]
  %s1 = inlined_call_operand.hbm [shape: f32[8,32], index: 1, kind: input, shape index: {}]
  %s2 = inlined_call_operand.hbm [shape: f32[1,8], index: 2, kind: output, shape index: {0}]
  %s3 = inlined_call_operand.hbm [shape: f32[1,8], index: 3, kind: output, shape index: {1}]
  %4 = xla_tuple %s2, %s3
  %s5 = sld [smem:[#allocation0]]
  $region42: #{tpu_custom_call.1} parent=0
    _
  %s7 = ssub.s32 1, %s5
  %s8 = scalar_select 0, %s7, %s5
  $region1: #{tpu_custom_call.1} parent=0
    #allocation3 [shape = 'u8[4096]{0}', space=vmem, size = 0x1000, scoped, tag = 'input window, operand 0, single buffered']
    #allocation4 [shape = 's32[1]{0}', space=sflag, size = 0x4, scoped, tag = 'scoped memory for tpu_custom_call.1']
    #allocation5 [shape = 's32[1]{0}', space=sflag, size = 0x4, scoped, tag = 'scoped memory for tpu_custom_call.1']
    #allocation6 [shape = 'u8[4096]{0}', space=vmem, size = 0x1000, scoped, tag = 'input window, operand 1, single buffered']
    #allocation7 [shape = 's32[1]{0}', space=sflag, size = 0x4, scoped, tag = 'scoped memory for tpu_custom_call.1']
    #allocation8 [shape = 'u8[512]{0}', space=vmem, size = 0x400, scoped, tag = 'output window, operand 0, single buffered']
    #allocation9 [shape = 'u8[512]{0}', space=vmem, size = 0x400, scoped, tag = 'output window, operand 1, single buffered']
    #allocation10 [shape = 's32[1]{0}', space=sflag, size = 0x4, scoped, tag = 'scoped memory for tpu_custom_call.1']
    %9 = vsyncpa [#allocation4], 0
    %10 = vsyncpa [#allocation7], 0
    %11 = vsyncpa [#allocation5], 0
    %12 = vsyncpa [#allocation10], 0
    // Predicated region
    $region2: #{tpu_custom_call.1} parent=1 // pred_check
      _
    $region3: #{tpu_custom_call.1} parent=1 // pred_check_branch
      %14 = sbr.rel (0) target = $region5
    $region4: #{tpu_custom_call.1} parent=1 // pred_region
      %s16 = ssub.s32 128, 128
      %17 = vsyncadd [#allocation4], %s16
      %s19 = sshll.u32 [#allocation3], 4
      %s20 = int_to_ptr.vmem [resolvable:$true] %s19
      %22 = dma.hbm_to_vmem [thread:$0]  %s0, 128, %s20, [#allocation4]
    $region5: #{tpu_custom_call.1} parent=1 // pred_fallthru
      _
    // Predicated region
    $region6: #{tpu_custom_call.1} parent=1 // pred_check
      _
    $region7: #{tpu_custom_call.1} parent=1 // pred_check_branch
      %24 = sbr.rel (0) target = $region9
    $region8: #{tpu_custom_call.1} parent=1 // pred_region
      %s26 = ssub.s32 128, 128
      %27 = vsyncadd [#allocation7], %s26
      %s29 = sshll.u32 [#allocation6], 4
      %s30 = int_to_ptr.vmem [resolvable:$true] %s29
      %32 = dma.hbm_to_vmem [thread:$0]  %s1, 128, %s30, [#allocation7]
    $region9: #{tpu_custom_call.1} parent=1 // pred_fallthru
      _
    // Predicated region
    $region10: #{tpu_custom_call.1} parent=1 // pred_check
      _
    $region11: #{tpu_custom_call.1} parent=1 // pred_check_branch
      %34 = sbr.rel (0) target = $region13
    $region12: #{tpu_custom_call.1} parent=1 // pred_region
      %35 = dma.done [#allocation4], 128
    $region13: #{tpu_custom_call.1} parent=1 // pred_fallthru
      _
    // Predicated region
    $region14: #{tpu_custom_call.1} parent=1 // pred_check
      _
    $region15: #{tpu_custom_call.1} parent=1 // pred_check_branch
      %37 = sbr.rel (0) target = $region17
    $region16: #{tpu_custom_call.1} parent=1 // pred_region
      %38 = dma.done [#allocation7], 128
    $region17: #{tpu_custom_call.1} parent=1 // pred_fallthru
      _
    %p39 = scmp.eq.s32.totalorder 0, 0
    // Predicated region
    $region18: #{tpu_custom_call.1} parent=1 // pred_check
      %p40 = pneg %p39
    $region19: #{tpu_custom_call.1} parent=1 // pred_check_branch
      %42 = sbr.rel (%p40) target = $region21
    $region20: #{tpu_custom_call.1} parent=1 // pred_region
      %vm43 = vcmask 57344
      %44 = vst.msk [vmem:[#allocation2] sm:$0x1] %vm43, 0.0
    $region21: #{tpu_custom_call.1} parent=1 // pred_fallthru
      _
    %s45 = smul.u32 0, 8
    %s46 = scalar_lea.vmem [#allocation3], %s45
    %v47 = vld [vmem:[%s46] sm:$0xff]
    %s48 = scalar_lea.vmem [#allocation6], %s45
    %v49 = vld [vmem:[%s48] sm:$0xff]
    %v50 = vld [vmem:[#allocation6] sm:$0xff]
    %v51 = vmul.f32 %v47, %v47
    %vm52 = vcmask 261120
    %v53 = vsel %vm52, %v51, 0.0
    %54 = vadd.xlane.f32.xlu0 %v53
    %v55 = vpop.xlane.xlu0 %54
    %v56 = vmax.f32 %v55, 1e-16
    %v57 = vrsqrt.pop %v56
    %v58 = vmul.f32 %v50, %v50
    %v59 = vsel %vm52, %v58, 0.0
    %60 = vadd.xlane.f32.xlu0 %v59
    %v61 = vpop.xlane.xlu0 %60
    %v62 = vmax.f32 %v61, 1e-16
    %v63 = vrsqrt.pop %v62
    %v64 = vmul.f32 %v47, %v57
    %v65 = vmul.f32 %v50, %v63
    %v67 = vsel %vm52, %v64, 0
    %v70 = vsel %vm52, %v65, 0
    %72 = vmatprep.subr.mxu0 0.0
    %73 = vmatpush1.xpose.msra.mxu0 %v70
    %74 = vmatprep.subr.mxu0 0.0
    %75 = vmatpush1.xpose.msra.mxu0 0.0
    %76 = vmatprep.subr.mxu0 0.0
    %77 = vmatpush1.xpose.msra.mxu0 0.0
    %78 = vmatprep.subr.mxu0 0.0
    %79 = vmatpush1.xpose.msra.mxu0 0.0
    %80 = vmatprep.subr.mxu0 0.0
    %81 = vmatpush1.xpose.msra.mxu0 0.0
    %82 = vmatprep.subr.mxu0 0.0
    %83 = vmatpush1.xpose.msra.mxu0 0.0
    %84 = vmatprep.subr.mxu0 0.0
    %85 = vmatpush1.xpose.msra.mxu0 0.0
    %86 = vmatprep.subr.mxu0 0.0
    %87 = vmatpush1.xpose.msra.mxu0 0.0
    %88 = vmatprep.subr.mxu0 0.0
    %89 = vmatpush1.xpose.msra.mxu0 0.0
    %90 = vmatprep.subr.mxu0 0.0
    %91 = vmatpush1.xpose.msra.mxu0 0.0
    %92 = vmatprep.subr.mxu0 0.0
    %93 = vmatpush1.xpose.msra.mxu0 0.0
    %94 = vmatprep.subr.mxu0 0.0
    %95 = vmatpush1.xpose.msra.mxu0 0.0
    %96 = vmatprep.subr.mxu0 0.0
    %97 = vmatpush1.xpose.msra.mxu0 0.0
    %98 = vmatprep.subr.mxu0 0.0
    %99 = vmatpush1.xpose.msra.mxu0 0.0
    %100 = vmatprep.subr.mxu0 0.0
    %101 = vmatpush1.xpose.msra.mxu0 0.0
    %102 = vmatprep.subr.mxu0 0.0
    %103 = vmatpush1.xpose.msra.mxu0 0.0
    %104 = vmatprep.subr.mxu0 0.0
    %105 = vmatpush1.xpose.msra.mxu0 0.0
    %106 = vmatprep.subr.mxu0 0.0
    %107 = vmatpush1.xpose.msra.mxu0 0.0
    %108 = vmatprep.subr.mxu0 0.0
    %109 = vmatpush1.xpose.msra.mxu0 0.0
    %110 = vmatprep.subr.mxu0 0.0
    %111 = vmatpush1.xpose.msra.mxu0 0.0
    %112 = vmatprep.subr.mxu0 0.0
    %113 = vmatpush1.xpose.msra.mxu0 0.0
    %114 = vmatprep.subr.mxu0 0.0
    %115 = vmatpush1.xpose.msra.mxu0 0.0
    %116 = vmatprep.subr.mxu0 0.0
    %117 = vmatpush1.xpose.msra.mxu0 0.0
    %118 = vmatprep.subr.mxu0 0.0
    %119 = vmatpush1.xpose.msra.mxu0 0.0
    %120 = vmatprep.subr.mxu0 0.0
    %121 = vmatpush1.xpose.msra.mxu0 0.0
    %122 = vmatprep.subr.mxu0 0.0
    %123 = vmatpush1.xpose.msra.mxu0 0.0
    %124 = vmatprep.subr.mxu0 0.0
    %125 = vmatpush1.xpose.msra.mxu0 0.0
    %126 = vmatprep.subr.mxu0 0.0
    %127 = vmatpush1.xpose.msra.mxu0 0.0
    %128 = vmatprep.subr.mxu0 0.0
    %129 = vmatpush1.xpose.msra.mxu0 0.0
    %130 = vmatprep.subr.mxu0 0.0
    %131 = vmatpush1.xpose.msra.mxu0 0.0
    %132 = vmatprep.subr.mxu0 0.0
    %133 = vmatpush1.xpose.msra.mxu0 0.0
    %134 = vmatprep.subr.mxu0 0.0
    %135 = vmatpush1.xpose.msra.mxu0 0.0
    %136 = vmatprep.mubr.f32.mxu0 0.0
    %137 = vmatmul.mubr.f32.gmra.mrb[0].mxu0 %v67
    %v138 = vpop.f32.mrb[0].mxu0
    %v139 = vadd.f32 0.0, %v138
    %v140 = vpop.f32.mrb[0].mxu0
    %141 = vdwg.mxu0
    %v142 = vmul.f32 %v139, 10.0
    %v143 = vmul.f32 %v142, 1.442695
    %v144 = vpow.pop %v143
    %vm145 = vcmask 64512
    %v147 = vsel %vm145, 1.0, 0
    %v150 = vsel %vm145, %v144, 0
    %152 = vmatprep.subr.mxu0 0.0
    %153 = vmatpush1.xpose.msra.mxu0 %v150
    %154 = vmatprep.subr.mxu0 0.0
    %155 = vmatpush1.xpose.msra.mxu0 0.0
    %156 = vmatprep.subr.mxu0 0.0
    %157 = vmatpush1.xpose.msra.mxu0 0.0
    %158 = vmatprep.subr.mxu0 0.0
    %159 = vmatpush1.xpose.msra.mxu0 0.0
    %160 = vmatprep.subr.mxu0 0.0
    %161 = vmatpush1.xpose.msra.mxu0 0.0
    %162 = vmatprep.subr.mxu0 0.0
    %163 = vmatpush1.xpose.msra.mxu0 0.0
    %164 = vmatprep.subr.mxu0 0.0
    %165 = vmatpush1.xpose.msra.mxu0 0.0
    %166 = vmatprep.subr.mxu0 0.0
    %167 = vmatpush1.xpose.msra.mxu0 0.0
    %168 = vmatprep.subr.mxu0 0.0
    %169 = vmatpush1.xpose.msra.mxu0 0.0
    %170 = vmatprep.subr.mxu0 0.0
    %171 = vmatpush1.xpose.msra.mxu0 0.0
    %172 = vmatprep.subr.mxu0 0.0
    %173 = vmatpush1.xpose.msra.mxu0 0.0
    %174 = vmatprep.subr.mxu0 0.0
    %175 = vmatpush1.xpose.msra.mxu0 0.0
    %176 = vmatprep.subr.mxu0 0.0
    %177 = vmatpush1.xpose.msra.mxu0 0.0
    %178 = vmatprep.subr.mxu0 0.0
    %179 = vmatpush1.xpose.msra.mxu0 0.0
    %180 = vmatprep.subr.mxu0 0.0
    %181 = vmatpush1.xpose.msra.mxu0 0.0
    %182 = vmatprep.subr.mxu0 0.0
    %183 = vmatpush1.xpose.msra.mxu0 0.0
    %184 = vmatprep.subr.mxu0 0.0
    %185 = vmatpush1.xpose.msra.mxu0 0.0
    %186 = vmatprep.subr.mxu0 0.0
    %187 = vmatpush1.xpose.msra.mxu0 0.0
    %188 = vmatprep.subr.mxu0 0.0
    %189 = vmatpush1.xpose.msra.mxu0 0.0
    %190 = vmatprep.subr.mxu0 0.0
    %191 = vmatpush1.xpose.msra.mxu0 0.0
    %192 = vmatprep.subr.mxu0 0.0
    %193 = vmatpush1.xpose.msra.mxu0 0.0
    %194 = vmatprep.subr.mxu0 0.0
    %195 = vmatpush1.xpose.msra.mxu0 0.0
    %196 = vmatprep.subr.mxu0 0.0
    %197 = vmatpush1.xpose.msra.mxu0 0.0
    %198 = vmatprep.subr.mxu0 0.0
    %199 = vmatpush1.xpose.msra.mxu0 0.0
    %200 = vmatprep.subr.mxu0 0.0
    %201 = vmatpush1.xpose.msra.mxu0 0.0
    %202 = vmatprep.subr.mxu0 0.0
    %203 = vmatpush1.xpose.msra.mxu0 0.0
    %204 = vmatprep.subr.mxu0 0.0
    %205 = vmatpush1.xpose.msra.mxu0 0.0
    %206 = vmatprep.subr.mxu0 0.0
    %207 = vmatpush1.xpose.msra.mxu0 0.0
    %208 = vmatprep.subr.mxu0 0.0
    %209 = vmatpush1.xpose.msra.mxu0 0.0
    %210 = vmatprep.subr.mxu0 0.0
    %211 = vmatpush1.xpose.msra.mxu0 0.0
    %212 = vmatprep.subr.mxu0 0.0
    %213 = vmatpush1.xpose.msra.mxu0 0.0
    %214 = vmatprep.subr.mxu0 0.0
    %215 = vmatpush1.xpose.msra.mxu0 0.0
    %216 = vmatprep.mubr.f32.mxu0 0.0
    %217 = vmatmul.mubr.f32.gmra.mrb[0].mxu0 %v147
    %v218 = vpop.f32.mrb[0].mxu0
    %v219 = vadd.f32 0.0, %v218
    %v220 = vpop.f32.mrb[0].mxu0
    %221 = vdwg.mxu0
    %v222 = vlog2.pop %v219
    %v223 = vmul.f32 %v222, 0.6931472
    %v224 = vmul.f32 %v47, %v49
    %v225 = vsel %vm52, 1.0, 0
    %v228 = vsel %vm52, %v224, 0
    %230 = vmatprep.subr.mxu0 0.0
    %231 = vmatpush1.xpose.msra.mxu0 %v228
    %232 = vmatprep.subr.mxu0 0.0
    %233 = vmatpush1.xpose.msra.mxu0 0.0
    %234 = vmatprep.subr.mxu0 0.0
    %235 = vmatpush1.xpose.msra.mxu0 0.0
    %236 = vmatprep.subr.mxu0 0.0
    %237 = vmatpush1.xpose.msra.mxu0 0.0
    %238 = vmatprep.subr.mxu0 0.0
    %239 = vmatpush1.xpose.msra.mxu0 0.0
    %240 = vmatprep.subr.mxu0 0.0
    %241 = vmatpush1.xpose.msra.mxu0 0.0
    %242 = vmatprep.subr.mxu0 0.0
    %243 = vmatpush1.xpose.msra.mxu0 0.0
    %244 = vmatprep.subr.mxu0 0.0
    %245 = vmatpush1.xpose.msra.mxu0 0.0
    %246 = vmatprep.subr.mxu0 0.0
    %247 = vmatpush1.xpose.msra.mxu0 0.0
    %248 = vmatprep.subr.mxu0 0.0
    %249 = vmatpush1.xpose.msra.mxu0 0.0
    %250 = vmatprep.subr.mxu0 0.0
    %251 = vmatpush1.xpose.msra.mxu0 0.0
    %252 = vmatprep.subr.mxu0 0.0
    %253 = vmatpush1.xpose.msra.mxu0 0.0
    %254 = vmatprep.subr.mxu0 0.0
    %255 = vmatpush1.xpose.msra.mxu0 0.0
    %256 = vmatprep.subr.mxu0 0.0
    %257 = vmatpush1.xpose.msra.mxu0 0.0
    %258 = vmatprep.subr.mxu0 0.0
    %259 = vmatpush1.xpose.msra.mxu0 0.0
    %260 = vmatprep.subr.mxu0 0.0
    %261 = vmatpush1.xpose.msra.mxu0 0.0
    %262 = vmatprep.subr.mxu0 0.0
    %263 = vmatpush1.xpose.msra.mxu0 0.0
    %264 = vmatprep.subr.mxu0 0.0
    %265 = vmatpush1.xpose.msra.mxu0 0.0
    %266 = vmatprep.subr.mxu0 0.0
    %267 = vmatpush1.xpose.msra.mxu0 0.0
    %268 = vmatprep.subr.mxu0 0.0
    %269 = vmatpush1.xpose.msra.mxu0 0.0
    %270 = vmatprep.subr.mxu0 0.0
    %271 = vmatpush1.xpose.msra.mxu0 0.0
    %272 = vmatprep.subr.mxu0 0.0
    %273 = vmatpush1.xpose.msra.mxu0 0.0
    %274 = vmatprep.subr.mxu0 0.0
    %275 = vmatpush1.xpose.msra.mxu0 0.0
    %276 = vmatprep.subr.mxu0 0.0
    %277 = vmatpush1.xpose.msra.mxu0 0.0
    %278 = vmatprep.subr.mxu0 0.0
    %279 = vmatpush1.xpose.msra.mxu0 0.0
    %280 = vmatprep.subr.mxu0 0.0
    %281 = vmatpush1.xpose.msra.mxu0 0.0
    %282 = vmatprep.subr.mxu0 0.0
    %283 = vmatpush1.xpose.msra.mxu0 0.0
    %284 = vmatprep.subr.mxu0 0.0
    %285 = vmatpush1.xpose.msra.mxu0 0.0
    %286 = vmatprep.subr.mxu0 0.0
    %287 = vmatpush1.xpose.msra.mxu0 0.0
    %288 = vmatprep.subr.mxu0 0.0
    %289 = vmatpush1.xpose.msra.mxu0 0.0
    %290 = vmatprep.subr.mxu0 0.0
    %291 = vmatpush1.xpose.msra.mxu0 0.0
    %292 = vmatprep.subr.mxu0 0.0
    %293 = vmatpush1.xpose.msra.mxu0 0.0
    %294 = vmatprep.mubr.f32.mxu0 0.0
    %295 = vmatmul.mubr.f32.gmra.mrb[0].mxu0 %v225
    %v296 = vpop.f32.mrb[0].mxu0
    %v297 = vadd.f32 0.0, %v296
    %v298 = vpop.f32.mrb[0].mxu0
    %299 = vdwg.mxu0
    %v301 = vsel %vm52, %v51, 0
    %303 = vmatprep.subr.mxu0 0.0
    %304 = vmatpush1.xpose.msra.mxu0 %v301
    %305 = vmatprep.subr.mxu0 0.0
    %306 = vmatpush1.xpose.msra.mxu0 0.0
    %307 = vmatprep.subr.mxu0 0.0
    %308 = vmatpush1.xpose.msra.mxu0 0.0
    %309 = vmatprep.subr.mxu0 0.0
    %310 = vmatpush1.xpose.msra.mxu0 0.0
    %311 = vmatprep.subr.mxu0 0.0
    %312 = vmatpush1.xpose.msra.mxu0 0.0
    %313 = vmatprep.subr.mxu0 0.0
    %314 = vmatpush1.xpose.msra.mxu0 0.0
    %315 = vmatprep.subr.mxu0 0.0
    %316 = vmatpush1.xpose.msra.mxu0 0.0
    %317 = vmatprep.subr.mxu0 0.0
    %318 = vmatpush1.xpose.msra.mxu0 0.0
    %319 = vmatprep.subr.mxu0 0.0
    %320 = vmatpush1.xpose.msra.mxu0 0.0
    %321 = vmatprep.subr.mxu0 0.0
    %322 = vmatpush1.xpose.msra.mxu0 0.0
    %323 = vmatprep.subr.mxu0 0.0
    %324 = vmatpush1.xpose.msra.mxu0 0.0
    %325 = vmatprep.subr.mxu0 0.0
    %326 = vmatpush1.xpose.msra.mxu0 0.0
    %327 = vmatprep.subr.mxu0 0.0
    %328 = vmatpush1.xpose.msra.mxu0 0.0
    %329 = vmatprep.subr.mxu0 0.0
    %330 = vmatpush1.xpose.msra.mxu0 0.0
    %331 = vmatprep.subr.mxu0 0.0
    %332 = vmatpush1.xpose.msra.mxu0 0.0
    %333 = vmatprep.subr.mxu0 0.0
    %334 = vmatpush1.xpose.msra.mxu0 0.0
    %335 = vmatprep.subr.mxu0 0.0
    %336 = vmatpush1.xpose.msra.mxu0 0.0
    %337 = vmatprep.subr.mxu0 0.0
    %338 = vmatpush1.xpose.msra.mxu0 0.0
    %339 = vmatprep.subr.mxu0 0.0
    %340 = vmatpush1.xpose.msra.mxu0 0.0
    %341 = vmatprep.subr.mxu0 0.0
    %342 = vmatpush1.xpose.msra.mxu0 0.0
    %343 = vmatprep.subr.mxu0 0.0
    %344 = vmatpush1.xpose.msra.mxu0 0.0
    %345 = vmatprep.subr.mxu0 0.0
    %346 = vmatpush1.xpose.msra.mxu0 0.0
    %347 = vmatprep.subr.mxu0 0.0
    %348 = vmatpush1.xpose.msra.mxu0 0.0
    %349 = vmatprep.subr.mxu0 0.0
    %350 = vmatpush1.xpose.msra.mxu0 0.0
    %351 = vmatprep.subr.mxu0 0.0
    %352 = vmatpush1.xpose.msra.mxu0 0.0
    %353 = vmatprep.subr.mxu0 0.0
    %354 = vmatpush1.xpose.msra.mxu0 0.0
    %355 = vmatprep.subr.mxu0 0.0
    %356 = vmatpush1.xpose.msra.mxu0 0.0
    %357 = vmatprep.subr.mxu0 0.0
    %358 = vmatpush1.xpose.msra.mxu0 0.0
    %359 = vmatprep.subr.mxu0 0.0
    %360 = vmatpush1.xpose.msra.mxu0 0.0
    %361 = vmatprep.subr.mxu0 0.0
    %362 = vmatpush1.xpose.msra.mxu0 0.0
    %363 = vmatprep.subr.mxu0 0.0
    %364 = vmatpush1.xpose.msra.mxu0 0.0
    %365 = vmatprep.subr.mxu0 0.0
    %366 = vmatpush1.xpose.msra.mxu0 0.0
    %367 = vmatprep.mubr.f32.mxu0 0.0
    %368 = vmatmul.mubr.f32.gmra.mrb[0].mxu0 %v225
    %v369 = vpop.f32.mrb[0].mxu0
    %v370 = vadd.f32 0.0, %v369
    %v371 = vpop.f32.mrb[0].mxu0
    %372 = vdwg.mxu0
    %v373 = vmul.f32 %v49, %v49
    %v375 = vsel %vm52, %v373, 0
    %377 = vmatprep.subr.mxu0 0.0
    %378 = vmatpush1.xpose.msra.mxu0 %v375
    %379 = vmatprep.subr.mxu0 0.0
    %380 = vmatpush1.xpose.msra.mxu0 0.0
    %381 = vmatprep.subr.mxu0 0.0
    %382 = vmatpush1.xpose.msra.mxu0 0.0
    %383 = vmatprep.subr.mxu0 0.0
    %384 = vmatpush1.xpose.msra.mxu0 0.0
    %385 = vmatprep.subr.mxu0 0.0
    %386 = vmatpush1.xpose.msra.mxu0 0.0
    %387 = vmatprep.subr.mxu0 0.0
    %388 = vmatpush1.xpose.msra.mxu0 0.0
    %389 = vmatprep.subr.mxu0 0.0
    %390 = vmatpush1.xpose.msra.mxu0 0.0
    %391 = vmatprep.subr.mxu0 0.0
    %392 = vmatpush1.xpose.msra.mxu0 0.0
    %393 = vmatprep.subr.mxu0 0.0
    %394 = vmatpush1.xpose.msra.mxu0 0.0
    %395 = vmatprep.subr.mxu0 0.0
    %396 = vmatpush1.xpose.msra.mxu0 0.0
    %397 = vmatprep.subr.mxu0 0.0
    %398 = vmatpush1.xpose.msra.mxu0 0.0
    %399 = vmatprep.subr.mxu0 0.0
    %400 = vmatpush1.xpose.msra.mxu0 0.0
    %401 = vmatprep.subr.mxu0 0.0
    %402 = vmatpush1.xpose.msra.mxu0 0.0
    %403 = vmatprep.subr.mxu0 0.0
    %404 = vmatpush1.xpose.msra.mxu0 0.0
    %405 = vmatprep.subr.mxu0 0.0
    %406 = vmatpush1.xpose.msra.mxu0 0.0
    %407 = vmatprep.subr.mxu0 0.0
    %408 = vmatpush1.xpose.msra.mxu0 0.0
    %409 = vmatprep.subr.mxu0 0.0
    %410 = vmatpush1.xpose.msra.mxu0 0.0
    %411 = vmatprep.subr.mxu0 0.0
    %412 = vmatpush1.xpose.msra.mxu0 0.0
    %413 = vmatprep.subr.mxu0 0.0
    %414 = vmatpush1.xpose.msra.mxu0 0.0
    %415 = vmatprep.subr.mxu0 0.0
    %416 = vmatpush1.xpose.msra.mxu0 0.0
    %417 = vmatprep.subr.mxu0 0.0
    %418 = vmatpush1.xpose.msra.mxu0 0.0
    %419 = vmatprep.subr.mxu0 0.0
    %420 = vmatpush1.xpose.msra.mxu0 0.0
    %421 = vmatprep.subr.mxu0 0.0
    %422 = vmatpush1.xpose.msra.mxu0 0.0
    %423 = vmatprep.subr.mxu0 0.0
    %424 = vmatpush1.xpose.msra.mxu0 0.0
    %425 = vmatprep.subr.mxu0 0.0
    %426 = vmatpush1.xpose.msra.mxu0 0.0
    %427 = vmatprep.subr.mxu0 0.0
    %428 = vmatpush1.xpose.msra.mxu0 0.0
    %429 = vmatprep.subr.mxu0 0.0
    %430 = vmatpush1.xpose.msra.mxu0 0.0
    %431 = vmatprep.subr.mxu0 0.0
    %432 = vmatpush1.xpose.msra.mxu0 0.0
    %433 = vmatprep.subr.mxu0 0.0
    %434 = vmatpush1.xpose.msra.mxu0 0.0
    %435 = vmatprep.subr.mxu0 0.0
    %436 = vmatpush1.xpose.msra.mxu0 0.0
    %437 = vmatprep.subr.mxu0 0.0
    %438 = vmatpush1.xpose.msra.mxu0 0.0
    %439 = vmatprep.subr.mxu0 0.0
    %440 = vmatpush1.xpose.msra.mxu0 0.0
    %441 = vmatprep.mubr.f32.mxu0 0.0
    %442 = vmatmul.mubr.f32.gmra.mrb[0].mxu0 %v225
    %v443 = vpop.f32.mrb[0].mxu0
    %v444 = vadd.f32 0.0, %v443
    %v445 = vpop.f32.mrb[0].mxu0
    %446 = vdwg.mxu0
    %v447 = vmul.f32 %v370, %v444
    %v448 = vmax.f32 %v447, 1e-16
    %v449 = vrsqrt.pop %v448
    %v450 = vmul.f32 %v297, %v449
    %v451 = vmul.f32 %v450, 10.0
    %v452 = vsub.f32 %v223, %v451
    %vm453 = vcmask 57344
    %454 = vst.msk [vmem:[#allocation8] sm:$0x1] %vm453, %v452
    %v455 = vld [vmem:[#allocation2] sm:$0x1]
    %v456 = vsel %vm145, %v144, 0.0
    %v457 = vrot.slane %v456, 4
    %v458 = vadd.f32 %v456, %v457
    %v459 = vrot.slane %v458, 2
    %v460 = vadd.f32 %v458, %v459
    %v461 = vrot.slane %v460, 1
    %v462 = vadd.f32 %v460, %v461
    %v463 = vadd.f32 %v455, %v462
    %464 = vst.msk [vmem:[#allocation2] sm:$0x1] %vm453, %v463
    // Predicated region
    $region22: #{tpu_custom_call.1} parent=1 // pred_check
      %p465 = pneg %p39
    $region23: #{tpu_custom_call.1} parent=1 // pred_check_branch
      %467 = sbr.rel (%p465) target = $region25
    $region24: #{tpu_custom_call.1} parent=1 // pred_region
      %v468 = vld [vmem:[#allocation3] sm:$0xff]
      %v469 = vmul.f32 %v468, %v50
      %v471 = vsel %vm52, %v469, 0
      %473 = vmatprep.subr.mxu0 0.0
      %474 = vmatpush1.xpose.msra.mxu0 %v471
      %475 = vmatprep.subr.mxu0 0.0
      %476 = vmatpush1.xpose.msra.mxu0 0.0
      %477 = vmatprep.subr.mxu0 0.0
      %478 = vmatpush1.xpose.msra.mxu0 0.0
      %479 = vmatprep.subr.mxu0 0.0
      %480 = vmatpush1.xpose.msra.mxu0 0.0
      %481 = vmatprep.subr.mxu0 0.0
      %482 = vmatpush1.xpose.msra.mxu0 0.0
      %483 = vmatprep.subr.mxu0 0.0
      %484 = vmatpush1.xpose.msra.mxu0 0.0
      %485 = vmatprep.subr.mxu0 0.0
      %486 = vmatpush1.xpose.msra.mxu0 0.0
      %487 = vmatprep.subr.mxu0 0.0
      %488 = vmatpush1.xpose.msra.mxu0 0.0
      %489 = vmatprep.subr.mxu0 0.0
      %490 = vmatpush1.xpose.msra.mxu0 0.0
      %491 = vmatprep.subr.mxu0 0.0
      %492 = vmatpush1.xpose.msra.mxu0 0.0
      %493 = vmatprep.subr.mxu0 0.0
      %494 = vmatpush1.xpose.msra.mxu0 0.0
      %495 = vmatprep.subr.mxu0 0.0
      %496 = vmatpush1.xpose.msra.mxu0 0.0
      %497 = vmatprep.subr.mxu0 0.0
      %498 = vmatpush1.xpose.msra.mxu0 0.0
      %499 = vmatprep.subr.mxu0 0.0
      %500 = vmatpush1.xpose.msra.mxu0 0.0
      %501 = vmatprep.subr.mxu0 0.0
      %502 = vmatpush1.xpose.msra.mxu0 0.0
      %503 = vmatprep.subr.mxu0 0.0
      %504 = vmatpush1.xpose.msra.mxu0 0.0
      %505 = vmatprep.subr.mxu0 0.0
      %506 = vmatpush1.xpose.msra.mxu0 0.0
      %507 = vmatprep.subr.mxu0 0.0
      %508 = vmatpush1.xpose.msra.mxu0 0.0
      %509 = vmatprep.subr.mxu0 0.0
      %510 = vmatpush1.xpose.msra.mxu0 0.0
      %511 = vmatprep.subr.mxu0 0.0
      %512 = vmatpush1.xpose.msra.mxu0 0.0
      %513 = vmatprep.subr.mxu0 0.0
      %514 = vmatpush1.xpose.msra.mxu0 0.0
      %515 = vmatprep.subr.mxu0 0.0
      %516 = vmatpush1.xpose.msra.mxu0 0.0
      %517 = vmatprep.subr.mxu0 0.0
      %518 = vmatpush1.xpose.msra.mxu0 0.0
      %519 = vmatprep.subr.mxu0 0.0
      %520 = vmatpush1.xpose.msra.mxu0 0.0
      %521 = vmatprep.subr.mxu0 0.0
      %522 = vmatpush1.xpose.msra.mxu0 0.0
      %523 = vmatprep.subr.mxu0 0.0
      %524 = vmatpush1.xpose.msra.mxu0 0.0
      %525 = vmatprep.subr.mxu0 0.0
      %526 = vmatpush1.xpose.msra.mxu0 0.0
      %527 = vmatprep.subr.mxu0 0.0
      %528 = vmatpush1.xpose.msra.mxu0 0.0
      %529 = vmatprep.subr.mxu0 0.0
      %530 = vmatpush1.xpose.msra.mxu0 0.0
      %531 = vmatprep.subr.mxu0 0.0
      %532 = vmatpush1.xpose.msra.mxu0 0.0
      %533 = vmatprep.subr.mxu0 0.0
      %534 = vmatpush1.xpose.msra.mxu0 0.0
      %535 = vmatprep.subr.mxu0 0.0
      %536 = vmatpush1.xpose.msra.mxu0 0.0
      %537 = vmatprep.mubr.f32.mxu0 0.0
      %538 = vmatmul.mubr.f32.gmra.mrb[0].mxu0 %v225
      %v539 = vpop.f32.mrb[0].mxu0
      %v540 = vadd.f32 0.0, %v539
      %v541 = vpop.f32.mrb[0].mxu0
      %542 = vdwg.mxu0
      %v543 = vmul.f32 %v468, %v468
      %v545 = vsel %vm52, %v543, 0
      %547 = vmatprep.subr.mxu0 0.0
      %548 = vmatpush1.xpose.msra.mxu0 %v545
      %549 = vmatprep.subr.mxu0 0.0
      %550 = vmatpush1.xpose.msra.mxu0 0.0
      %551 = vmatprep.subr.mxu0 0.0
      %552 = vmatpush1.xpose.msra.mxu0 0.0
      %553 = vmatprep.subr.mxu0 0.0
      %554 = vmatpush1.xpose.msra.mxu0 0.0
      %555 = vmatprep.subr.mxu0 0.0
      %556 = vmatpush1.xpose.msra.mxu0 0.0
      %557 = vmatprep.subr.mxu0 0.0
      %558 = vmatpush1.xpose.msra.mxu0 0.0
      %559 = vmatprep.subr.mxu0 0.0
      %560 = vmatpush1.xpose.msra.mxu0 0.0
      %561 = vmatprep.subr.mxu0 0.0
      %562 = vmatpush1.xpose.msra.mxu0 0.0
      %563 = vmatprep.subr.mxu0 0.0
      %564 = vmatpush1.xpose.msra.mxu0 0.0
      %565 = vmatprep.subr.mxu0 0.0
      %566 = vmatpush1.xpose.msra.mxu0 0.0
      %567 = vmatprep.subr.mxu0 0.0
      %568 = vmatpush1.xpose.msra.mxu0 0.0
      %569 = vmatprep.subr.mxu0 0.0
      %570 = vmatpush1.xpose.msra.mxu0 0.0
      %571 = vmatprep.subr.mxu0 0.0
      %572 = vmatpush1.xpose.msra.mxu0 0.0
      %573 = vmatprep.subr.mxu0 0.0
      %574 = vmatpush1.xpose.msra.mxu0 0.0
      %575 = vmatprep.subr.mxu0 0.0
      %576 = vmatpush1.xpose.msra.mxu0 0.0
      %577 = vmatprep.subr.mxu0 0.0
      %578 = vmatpush1.xpose.msra.mxu0 0.0
      %579 = vmatprep.subr.mxu0 0.0
      %580 = vmatpush1.xpose.msra.mxu0 0.0
      %581 = vmatprep.subr.mxu0 0.0
      %582 = vmatpush1.xpose.msra.mxu0 0.0
      %583 = vmatprep.subr.mxu0 0.0
      %584 = vmatpush1.xpose.msra.mxu0 0.0
      %585 = vmatprep.subr.mxu0 0.0
      %586 = vmatpush1.xpose.msra.mxu0 0.0
      %587 = vmatprep.subr.mxu0 0.0
      %588 = vmatpush1.xpose.msra.mxu0 0.0
      %589 = vmatprep.subr.mxu0 0.0
      %590 = vmatpush1.xpose.msra.mxu0 0.0
      %591 = vmatprep.subr.mxu0 0.0
      %592 = vmatpush1.xpose.msra.mxu0 0.0
      %593 = vmatprep.subr.mxu0 0.0
      %594 = vmatpush1.xpose.msra.mxu0 0.0
      %595 = vmatprep.subr.mxu0 0.0
      %596 = vmatpush1.xpose.msra.mxu0 0.0
      %597 = vmatprep.subr.mxu0 0.0
      %598 = vmatpush1.xpose.msra.mxu0 0.0
      %599 = vmatprep.subr.mxu0 0.0
      %600 = vmatpush1.xpose.msra.mxu0 0.0
      %601 = vmatprep.subr.mxu0 0.0
      %602 = vmatpush1.xpose.msra.mxu0 0.0
      %603 = vmatprep.subr.mxu0 0.0
      %604 = vmatpush1.xpose.msra.mxu0 0.0
      %605 = vmatprep.subr.mxu0 0.0
      %606 = vmatpush1.xpose.msra.mxu0 0.0
      %607 = vmatprep.subr.mxu0 0.0
      %608 = vmatpush1.xpose.msra.mxu0 0.0
      %609 = vmatprep.subr.mxu0 0.0
      %610 = vmatpush1.xpose.msra.mxu0 0.0
      %611 = vmatprep.mubr.f32.mxu0 0.0
      %612 = vmatmul.mubr.f32.gmra.mrb[0].mxu0 %v225
      %v613 = vpop.f32.mrb[0].mxu0
      %v614 = vadd.f32 0.0, %v613
      %v615 = vpop.f32.mrb[0].mxu0
      %616 = vdwg.mxu0
      %v618 = vsel %vm52, %v58, 0
      %620 = vmatprep.subr.mxu0 0.0
      %621 = vmatpush1.xpose.msra.mxu0 %v618
      %622 = vmatprep.subr.mxu0 0.0
      %623 = vmatpush1.xpose.msra.mxu0 0.0
      %624 = vmatprep.subr.mxu0 0.0
      %625 = vmatpush1.xpose.msra.mxu0 0.0
      %626 = vmatprep.subr.mxu0 0.0
      %627 = vmatpush1.xpose.msra.mxu0 0.0
      %628 = vmatprep.subr.mxu0 0.0
      %629 = vmatpush1.xpose.msra.mxu0 0.0
      %630 = vmatprep.subr.mxu0 0.0
      %631 = vmatpush1.xpose.msra.mxu0 0.0
      %632 = vmatprep.subr.mxu0 0.0
      %633 = vmatpush1.xpose.msra.mxu0 0.0
      %634 = vmatprep.subr.mxu0 0.0
      %635 = vmatpush1.xpose.msra.mxu0 0.0
      %636 = vmatprep.subr.mxu0 0.0
      %637 = vmatpush1.xpose.msra.mxu0 0.0
      %638 = vmatprep.subr.mxu0 0.0
      %639 = vmatpush1.xpose.msra.mxu0 0.0
      %640 = vmatprep.subr.mxu0 0.0
      %641 = vmatpush1.xpose.msra.mxu0 0.0
      %642 = vmatprep.subr.mxu0 0.0
      %643 = vmatpush1.xpose.msra.mxu0 0.0
      %644 = vmatprep.subr.mxu0 0.0
      %645 = vmatpush1.xpose.msra.mxu0 0.0
      %646 = vmatprep.subr.mxu0 0.0
      %647 = vmatpush1.xpose.msra.mxu0 0.0
      %648 = vmatprep.subr.mxu0 0.0
      %649 = vmatpush1.xpose.msra.mxu0 0.0
      %650 = vmatprep.subr.mxu0 0.0
      %651 = vmatpush1.xpose.msra.mxu0 0.0
      %652 = vmatprep.subr.mxu0 0.0
      %653 = vmatpush1.xpose.msra.mxu0 0.0
      %654 = vmatprep.subr.mxu0 0.0
      %655 = vmatpush1.xpose.msra.mxu0 0.0
      %656 = vmatprep.subr.mxu0 0.0
      %657 = vmatpush1.xpose.msra.mxu0 0.0
      %658 = vmatprep.subr.mxu0 0.0
      %659 = vmatpush1.xpose.msra.mxu0 0.0
      %660 = vmatprep.subr.mxu0 0.0
      %661 = vmatpush1.xpose.msra.mxu0 0.0
      %662 = vmatprep.subr.mxu0 0.0
      %663 = vmatpush1.xpose.msra.mxu0 0.0
      %664 = vmatprep.subr.mxu0 0.0
      %665 = vmatpush1.xpose.msra.mxu0 0.0
      %666 = vmatprep.subr.mxu0 0.0
      %667 = vmatpush1.xpose.msra.mxu0 0.0
      %668 = vmatprep.subr.mxu0 0.0
      %669 = vmatpush1.xpose.msra.mxu0 0.0
      %670 = vmatprep.subr.mxu0 0.0
      %671 = vmatpush1.xpose.msra.mxu0 0.0
      %672 = vmatprep.subr.mxu0 0.0
      %673 = vmatpush1.xpose.msra.mxu0 0.0
      %674 = vmatprep.subr.mxu0 0.0
      %675 = vmatpush1.xpose.msra.mxu0 0.0
      %676 = vmatprep.subr.mxu0 0.0
      %677 = vmatpush1.xpose.msra.mxu0 0.0
      %678 = vmatprep.subr.mxu0 0.0
      %679 = vmatpush1.xpose.msra.mxu0 0.0
      %680 = vmatprep.subr.mxu0 0.0
      %681 = vmatpush1.xpose.msra.mxu0 0.0
      %682 = vmatprep.subr.mxu0 0.0
      %683 = vmatpush1.xpose.msra.mxu0 0.0
      %684 = vmatprep.mubr.f32.mxu0 0.0
      %685 = vmatmul.mubr.f32.gmra.mrb[0].mxu0 %v225
      %v686 = vpop.f32.mrb[0].mxu0
      %v687 = vadd.f32 0.0, %v686
      %v688 = vpop.f32.mrb[0].mxu0
      %689 = vdwg.mxu0
      %v690 = vmul.f32 %v614, %v687
      %v691 = vmax.f32 %v690, 1e-16
      %v692 = vrsqrt.pop %v691
      %v693 = vmul.f32 %v540, %v692
      %v694 = vmul.f32 %v693, 10.0
      %v695 = vld [vmem:[#allocation2] sm:$0x1]
      %v696 = vlog2.pop %v695
      %v697 = vmul.f32 %v696, 0.6931472
      %v698 = vsub.f32 %v697, %v694
      %699 = vst.msk [vmem:[#allocation9] sm:$0x1] %vm453, %v698
    $region25: #{tpu_custom_call.1} parent=1 // pred_fallthru
      _
    // Predicated region
    $region26: #{tpu_custom_call.1} parent=1 // pred_check
      _
    $region27: #{tpu_custom_call.1} parent=1 // pred_check_branch
      %701 = sbr.rel (0) target = $region29
    $region28: #{tpu_custom_call.1} parent=1 // pred_region
      %s703 = ssub.s32 16, 16
      %704 = vsyncadd [#allocation5], %s703
      %s706 = sshll.u32 [#allocation8], 4
      %s707 = int_to_ptr.vmem [resolvable:$true] %s706
      %709 = dma.vmem_to_hbm [thread:$0]  %s707, 16, %s2, [#allocation5]
    $region29: #{tpu_custom_call.1} parent=1 // pred_fallthru
      _
    // Predicated region
    $region30: #{tpu_custom_call.1} parent=1 // pred_check
      _
    $region31: #{tpu_custom_call.1} parent=1 // pred_check_branch
      %711 = sbr.rel (0) target = $region33
    $region32: #{tpu_custom_call.1} parent=1 // pred_region
      %s713 = ssub.s32 16, 16
      %714 = vsyncadd [#allocation10], %s713
      %s716 = sshll.u32 [#allocation9], 4
      %s717 = int_to_ptr.vmem [resolvable:$true] %s716
      %719 = dma.vmem_to_hbm [thread:$0]  %s717, 16, %s3, [#allocation10]
    $region33: #{tpu_custom_call.1} parent=1 // pred_fallthru
      _
    // Predicated region
    $region34: #{tpu_custom_call.1} parent=1 // pred_check
      _
    $region35: #{tpu_custom_call.1} parent=1 // pred_check_branch
      %721 = sbr.rel (0) target = $region37
    $region36: #{tpu_custom_call.1} parent=1 // pred_region
      %722 = dma.done [#allocation5], 16
    $region37: #{tpu_custom_call.1} parent=1 // pred_fallthru
      _
    // Predicated region
    $region38: #{tpu_custom_call.1} parent=1 // pred_check
      _
    $region39: #{tpu_custom_call.1} parent=1 // pred_check_branch
      %724 = sbr.rel (0) target = $region41
    $region40: #{tpu_custom_call.1} parent=1 // pred_region
      %725 = dma.done [#allocation10], 16
    $region41: #{tpu_custom_call.1} parent=1 // pred_fallthru
      _
    %726 = vsyncpa [#allocation4], 1
    %727 = vsyncpa [#allocation7], 1
    %728 = vsyncpa [#allocation5], 1
    %729 = vsyncpa [#allocation10], 1

</llo_original>
